<compile_context>
chip_gen: v7x
topology: tpu7x:2x2x1
jax: 0.10.0
libtpu: 0.0.40
codegen_flags: <defaults>
</compile_context>

<pallas_src>
import jax
import jax.numpy as jnp
from jax.experimental import pallas as pl
from jax.experimental.pallas import tpu as pltpu


_MIB = 1024 * 1024


def _tpu_generation():
    try:
        kind = jax.devices()[0].device_kind.lower()
    except Exception:
        return "other"
    if "v7" in kind:
        return "v7x"
    if "v6" in kind:
        return "v6e"
    if "v5 lite" in kind or "v5lite" in kind or "v5e" in kind:
        return "v5e"
    return "other"


# Per-generation tiling / VMEM policy (roofline-derived, see review):
#   v6e : needs ~650 FLOP/B -> rt=1024 makes the weight stream MXU-bound.
#   v5e : needs ~240 FLOP/B -> rt=512 comfortably compute-bound.
#   v7x : needs ~310 FLOP/B -> rt=512 suffices; VMEM is only 64 MiB/TC so the
#         scoped limit is capped at 48 MiB and the resident operand is
#         single-buffered.
_GEN_POLICY = {
    "v6e":   dict(row_tile=1024, col_tile=512, vmem_cap=96 * _MIB, single_buffer_resident=False),
    "v5e":   dict(row_tile=512,  col_tile=512, vmem_cap=96 * _MIB, single_buffer_resident=False),
    "v7x":   dict(row_tile=512,  col_tile=512, vmem_cap=48 * _MIB, single_buffer_resident=True),
    "other": dict(row_tile=512,  col_tile=512, vmem_cap=64 * _MIB, single_buffer_resident=False),
}


def unembed_kernel(x_ref, w_ref, b_ref, o_ref):
    # One MXU matmul per (row-tile, vocab-tile): low-precision operands,
    # f32 accumulation, bias added in f32, single cast on store.
    acc = jnp.dot(x_ref[...], w_ref[...], preferred_element_type=jnp.float32)
    o_ref[...] = (acc + b_ref[...]).astype(o_ref.dtype)


def prepare_unembedding_params(w_u, b_u, *, compute_dtype=jnp.bfloat16):
    """One-time (model-init) conversion of the unembedding parameters.

    Hoists the full-weight cast out of the per-call path so every forward call
    streams W_U exactly in the dtype the MXU consumes (no per-call XLA copy ops
    reading/writing the full f32 weight).
    """
    w_c = w_u.astype(compute_dtype)
    b2d = jnp.asarray(b_u, dtype=jnp.float32).reshape(1, -1)
    return w_c, b2d


def unembed_forward(residual, w_u, b_u, *, row_tile=None, col_tile=None,
                    compute_dtype=jnp.bfloat16, out_dtype=None,
                    vmem_limit_bytes=None):
    """residual: [batch, seq, d_model] -> logits [batch, seq, vocab].

    `w_u` / `b_u` may be the raw parameters or (preferred) the output of
    `prepare_unembedding_params`, which avoids per-call weight casts.
    """
    batch, seq, d_model = residual.shape
    d_model_w, vocab = w_u.shape
    assert d_model == d_model_w, "weight/residual d_model mismatch"

    policy = _GEN_POLICY[_tpu_generation()]
    rt = row_tile if row_tile is not None else policy["row_tile"]
    ct = col_tile if col_tile is not None else policy["col_tile"]
    out_dtype = residual.dtype if out_dtype is None else out_dtype

    x2d = residual.reshape(batch * seq, d_model)
    m = x2d.shape[0]

    # Cap tiles at the problem size (full-dim blocks are always layout-legal).
    # When a tile is smaller than the array it stays a multiple of 128, so the
    # (8/16, 128) constraint holds and ragged last blocks are simply masked by
    # Pallas -- no padded copies of x/W and no output slice afterwards.
    rt = min(rt, m)
    ct = min(ct, vocab)

    # Only the (small) activations get cast per call; the weight cast should
    # have been hoisted to init via prepare_unembedding_params.
    x_c = x2d if x2d.dtype == compute_dtype else x2d.astype(compute_dtype)
    w_c = w_u if w_u.dtype == compute_dtype else w_u.astype(compute_dtype)
    b2d = jnp.asarray(b_u, dtype=jnp.float32).reshape(1, vocab)

    m_tiles = pl.cdiv(m, rt)
    v_tiles = pl.cdiv(vocab, ct)

    # Grid-order heuristic: the operand whose block index depends only on the
    # inner grid axis is re-streamed from HBM once per outer step.  Pick the
    # order that re-streams the smaller operand (weights for decode-sized M,
    # activations for huge-M prefill/training with modest vocab).
    elt = jnp.dtype(compute_dtype).itemsize
    w_bytes = d_model * vocab * elt
    x_bytes = m * d_model * elt
    rows_outer = (m_tiles - 1) * w_bytes <= (v_tiles - 1) * x_bytes

    if rows_outer:
        grid = (m_tiles, v_tiles)
        x_map = lambda i, j: (i, 0)   # resident across the inner (vocab) axis
        w_map = lambda i, j: (0, j)   # streamed every inner step
        o_map = lambda i, j: (i, j)
        resident_is_x = True
    else:
        grid = (v_tiles, m_tiles)
        x_map = lambda j, i: (i, 0)   # streamed every inner step
        w_map = lambda j, i: (0, j)   # resident across the inner (row) axis
        o_map = lambda j, i: (i, j)
        resident_is_x = False
    b_map = w_map

    # On the VMEM-tight generation (v7x), single-buffer the resident operand:
    # its block index only changes once per outer step, so the extra stall is
    # negligible and the freed VMEM pays for bigger tiles.
    x_kwargs, w_kwargs = {}, {}
    if policy["single_buffer_resident"]:
        if resident_is_x:
            x_kwargs["pipeline_mode"] = pl.Buffered(1)
        else:
            w_kwargs["pipeline_mode"] = pl.Buffered(1)

    # Scoped VMEM limit derived from the actual tile footprint (+ headroom for
    # compiler scratch), clamped per generation so we never hand the compiler
    # v7x's entire 64 MiB physical VMEM.
    out_elt = jnp.dtype(out_dtype).itemsize
    x_bufs = 1 if (policy["single_buffer_resident"] and resident_is_x) else 2
    w_bufs = 1 if (policy["single_buffer_resident"] and not resident_is_x) else 2
    footprint = (x_bufs * rt * d_model * elt
                 + w_bufs * d_model * ct * elt
                 + 2 * rt * ct * out_elt
                 + 2 * ct * 4)
    if vmem_limit_bytes is None:
        vmem_limit_bytes = min(policy["vmem_cap"],
                               max(32 * _MIB, footprint + 16 * _MIB))

    out2d = pl.pallas_call(
        unembed_kernel,
        out_shape=jax.ShapeDtypeStruct((m, vocab), out_dtype),
        grid_spec=pltpu.PrefetchScalarGridSpec(
            num_scalar_prefetch=0,
            grid=grid,
            in_specs=[
                # row tile of the flattened residual (d_model kept whole)
                pl.BlockSpec((rt, d_model), x_map, **x_kwargs),
                # vocab-column tile of the unembedding matrix
                pl.BlockSpec((d_model, ct), w_map, **w_kwargs),
                # matching bias slice, (1, ct) so it lands on (sublane, lane)
                pl.BlockSpec((1, ct), b_map),
            ],
            out_specs=pl.BlockSpec((rt, ct), o_map),
        ),
        compiler_params=pltpu.CompilerParams(
            # Every output tile is independent (the d_model contraction stays
            # inside a single kernel invocation), so both axes are parallel.
            dimension_semantics=("parallel", "parallel"),
            vmem_limit_bytes=int(vmem_limit_bytes),
        ),
    )(x_c, w_c, b2d)

    return out2d.reshape(batch, seq, vocab)


if __name__ == "__main__":
    # Small shapes consistent with the module's configuration.
    batch, seq = 2, 8
    embedding_dimensionality = 32
    vocabulary_size = 100   # deliberately not a multiple of 128 -> exercises ragged tiles

    key = jax.random.PRNGKey(0)
    k_x, k_w, k_b = jax.random.split(key, 3)

    # nn.init.normal_(W_U, std=embedding_dimensionality); biases are zeros.
    unembedding_weights = (
        jax.random.normal(k_w, (embedding_dimensionality, vocabulary_size),
                          dtype=jnp.float32) * embedding_dimensionality)
    unembedding_biases = jnp.zeros((vocabulary_size,), dtype=jnp.float32)

    residual = jax.random.normal(
        k_x, (batch, seq, embedding_dimensionality), dtype=jnp.float32)

    # Init-time (hoisted) parameter prep: bf16 weight + (1, vocab) f32 bias.
    w_prep, b_prep = prepare_unembedding_params(
        unembedding_weights, unembedding_biases)

    out = unembed_forward(residual, w_prep, b_prep)
    out = jax.block_until_ready(out)

    # Pure-JAX reference on the same bf16-rounded operands (kernel uses bf16
    # MXU inputs with f32 accumulation -- deliberate deviation from the f32
    # module; pass compute_dtype=jnp.float32 for f32-faithful math).
    x_ref = residual.astype(jnp.bfloat16).astype(jnp.float32)
    w_ref = unembedding_weights.astype(jnp.bfloat16).astype(jnp.float32)
    ref = x_ref @ w_ref + unembedding_biases
    assert out.shape == (batch, seq, vocabulary_size)
    assert out.dtype == residual.dtype
    assert jnp.allclose(out, ref, atol=5e-2, rtol=1e-3), (
        float(jnp.max(jnp.abs(out - ref))))

    # Extra check: non-zero bias + f32 compute path (raw, un-prepared params).
    bias2 = 10.0 * jax.random.normal(k_b, (vocabulary_size,), dtype=jnp.float32)
    out2 = unembed_forward(residual, unembedding_weights, bias2,
                           compute_dtype=jnp.float32)
    out2 = jax.block_until_ready(out2)
    ref2 = residual @ unembedding_weights + bias2
    assert jnp.allclose(out2, ref2, atol=5e-2, rtol=2e-3), (
        float(jnp.max(jnp.abs(out2 - ref2))))

    print("KERNEL_OK")
</pallas_src>

<mosaic_0001>
module attributes {stable_mosaic.version = 11 : i64} {
  func.func @unembed_kernel(%arg0: i32, %arg1: i32, %arg2: memref<16x32xbf16, #tpu.memory_space<vmem>>, %arg3: memref<32x100xbf16, #tpu.memory_space<vmem>>, %arg4: memref<1x100xf32, #tpu.memory_space<vmem>>, %arg5: memref<16x100xf32, #tpu.memory_space<vmem>>) attributes {dimension_semantics = [#tpu.dimension_semantics<parallel>, #tpu.dimension_semantics<parallel>], iteration_bounds = array<i64: 1, 1>, scalar_prefetch = 0 : i64, scratch_operands = 0 : i64, tpu.core_type = #tpu.core_type<tc>, window_params = [{transform_indices = @transform_0, window_bounds = array<i64: 16, 32>}, {transform_indices = @transform_1, window_bounds = array<i64: 32, 100>}, {transform_indices = @transform_2, window_bounds = array<i64: 1, 100>}, {transform_indices = @transform_3, window_bounds = array<i64: 16, 100>}]} {
    %c0 = arith.constant 0 : index
    %c0_0 = arith.constant 0 : index
    %0 = vector.load %arg2[%c0, %c0_0] : memref<16x32xbf16, #tpu.memory_space<vmem>>, vector<16x32xbf16>
    %c0_1 = arith.constant 0 : index
    %c0_2 = arith.constant 0 : index
    %1 = vector.load %arg3[%c0_1, %c0_2] : memref<32x100xbf16, #tpu.memory_space<vmem>>, vector<32x100xbf16>
    %cst = arith.constant dense<0.000000e+00> : vector<16x100xf32>
    %2 = tpu.matmul %0, %1, %cst {dimension_numbers = #tpu.dot_dimension_numbers<[1], [0], [0], [1], [0, 0, 1, 1], [], []>} : vector<16x32xbf16>, vector<32x100xbf16>, vector<16x100xf32> -> vector<16x100xf32>
    %c0_3 = arith.constant 0 : index
    %c0_4 = arith.constant 0 : index
    %3 = vector.load %arg4[%c0_3, %c0_4] : memref<1x100xf32, #tpu.memory_space<vmem>>, vector<1x100xf32>
    %4 = vector.broadcast %3 : vector<1x100xf32> to vector<16x100xf32>
    %5 = arith.addf %2, %4 : vector<16x100xf32>
    %c0_5 = arith.constant 0 : index
    %c0_6 = arith.constant 0 : index
    %6 = vector.load %arg5[%c0_5, %c0_6] : memref<16x100xf32, #tpu.memory_space<vmem>>, vector<16x100xf32>
    tpu.vector_store %arg5[%c0_5, %c0_6], %5 {strides = array<i32>} : memref<16x100xf32, #tpu.memory_space<vmem>>, vector<16x100xf32>,
    return
  }
  func.func @transform_0(%arg0: i32, %arg1: i32) -> (i32, i32) {
    %c0_i32 = arith.constant 0 : i32
    %c0_i32_0 = arith.constant 0 : i32
    return %arg0, %c0_i32 : i32, i32
  }
  func.func @transform_1(%arg0: i32, %arg1: i32) -> (i32, i32) {
    %c0_i32 = arith.constant 0 : i32
    %c0_i32_0 = arith.constant 0 : i32
    return %c0_i32, %arg1 : i32, i32
  }
  func.func @transform_2(%arg0: i32, %arg1: i32) -> (i32, i32) {
    %c0_i32 = arith.constant 0 : i32
    %c0_i32_0 = arith.constant 0 : i32
    return %c0_i32, %arg1 : i32, i32
  }
  func.func @transform_3(%arg0: i32, %arg1: i32) -> (i32, i32) {
    %c0_i32 = arith.constant 0 : i32
    return %arg0, %arg1 : i32, i32
  }
}

</mosaic_0001>

<llo_original>
// kernel: tpu_custom_call.1
$region0: #{tpu_custom_call.1}
  #allocation0 [shape = 'u32[]', space=smem, size = 0x4, offset = 0x4, fixed_abs, tag = 'smem constant byte address 0x4 - core index']
  #allocation1 [shape = 'u32[144,128]{1,0:T(1,128)}', space=vmem, size = 0x12000, scoped, tag = 'internal scratch']
  %s0 = inlined_call_operand.hbm [shape: bf16[16,32], index: 0, kind: input, shape index: {}]
  %s1 = inlined_call_operand.hbm [shape: bf16[32,100], index: 1, kind: input, shape index: {}]
  %s2 = inlined_call_operand.vmem [shape: f32[1,100], index: 2, kind: input, shape index: {}]
  %s3 = inlined_call_operand.hbm [shape: f32[16,100], index: 3, kind: output, shape index: {}]
  %s4 = sld [smem:[#allocation0]]
  $region30: #{tpu_custom_call.1} parent=0
    _
  %s6 = ssub.s32 1, %s4
  %s7 = scalar_select 0, %s6, %s4
  $region1: #{tpu_custom_call.1} parent=0
    #allocation2 [shape = 'u8[4096]{0}', space=vmem, size = 0x1000, scoped, tag = 'input window, operand 0, single buffered']
    #allocation3 [shape = 's32[1]{0}', space=sflag, size = 0x4, scoped, tag = 'scoped memory for tpu_custom_call.1']
    #allocation4 [shape = 's32[1]{0}', space=sflag, size = 0x4, scoped, tag = 'scoped memory for tpu_custom_call.1']
    #allocation5 [shape = 'u8[8192]{0}', space=vmem, size = 0x2000, scoped, tag = 'input window, operand 1, single buffered']
    #allocation6 [shape = 's32[1]{0}', space=sflag, size = 0x4, scoped, tag = 'scoped memory for tpu_custom_call.1']
    #allocation7 [shape = 'u8[8192]{0}', space=vmem, size = 0x2000, scoped, tag = 'output window, operand 0, single buffered']
    %8 = vsyncpa [#allocation3], 0
    %9 = vsyncpa [#allocation6], 0
    %10 = vsyncpa [#allocation4], 0
    // Predicated region
    $region2: #{tpu_custom_call.1} parent=1 // pred_check
      _
    $region3: #{tpu_custom_call.1} parent=1 // pred_check_branch
      %12 = sbr.rel (0) target = $region5
    $region4: #{tpu_custom_call.1} parent=1 // pred_region
      %s14 = ssub.s32 128, 128
      %15 = vsyncadd [#allocation3], %s14
      %s16 = sshll.u32 [#allocation2], 4
      %s17 = int_to_ptr.vmem [resolvable:$true] %s16
      %22 = dma.hbm_to_vmem [thread:$0]  %s0, 128, %s17, [#allocation3], 64, 64, 4
    $region5: #{tpu_custom_call.1} parent=1 // pred_fallthru
      _
    // Predicated region
    $region6: #{tpu_custom_call.1} parent=1 // pred_check
      _
    $region7: #{tpu_custom_call.1} parent=1 // pred_check_branch
      %24 = sbr.rel (0) target = $region9
    $region8: #{tpu_custom_call.1} parent=1 // pred_region
      %s26 = ssub.s32 256, 256
      %27 = vsyncadd [#allocation6], %s26
      %s28 = sshll.u32 [#allocation5], 4
      %s29 = int_to_ptr.vmem [resolvable:$true] %s28
      %34 = dma.hbm_to_vmem [thread:$0]  %s1, 256, %s29, [#allocation6], 64, 64, 4
    $region9: #{tpu_custom_call.1} parent=1 // pred_fallthru
      _
    // Predicated region
    $region10: #{tpu_custom_call.1} parent=1 // pred_check
      _
    $region11: #{tpu_custom_call.1} parent=1 // pred_check_branch
      %36 = sbr.rel (0) target = $region13
    $region12: #{tpu_custom_call.1} parent=1 // pred_region
      _
    $region13: #{tpu_custom_call.1} parent=1 // pred_fallthru
      _
    // Predicated region
    $region14: #{tpu_custom_call.1} parent=1 // pred_check
      _
    $region15: #{tpu_custom_call.1} parent=1 // pred_check_branch
      %38 = sbr.rel (0) target = $region17
    $region16: #{tpu_custom_call.1} parent=1 // pred_region
      %39 = dma.done [#allocation3], 128
    $region17: #{tpu_custom_call.1} parent=1 // pred_fallthru
      _
    // Predicated region
    $region18: #{tpu_custom_call.1} parent=1 // pred_check
      _
    $region19: #{tpu_custom_call.1} parent=1 // pred_check_branch
      %41 = sbr.rel (0) target = $region21
    $region20: #{tpu_custom_call.1} parent=1 // pred_region
      %42 = dma.done [#allocation6], 256
    $region21: #{tpu_custom_call.1} parent=1 // pred_fallthru
      _
    %v44 = vld [vmem:[#allocation2] sm:$0xf]
    %v45 = vld [vmem:[#allocation2 + $0x4] sm:$0xf]
    %v46 = vld [vmem:[#allocation5] sm:$0xf]
    %v47 = vld [vmem:[#allocation5 + $0x4] sm:$0xf]
    %v48 = vld [vmem:[#allocation5 + $0x8] sm:$0xf]
    %v49 = vld [vmem:[#allocation5 + $0xc] sm:$0xf]
    %v50 = vld [vmem:[%s2] sm:$0x1]
    %v52 = vlaneseq
    %v53 = vshrl.u32 %v52, 7
    %v54 = vsub.s32 0, %v53
    %v55 = vrot.slane %v50, %v54
    %v59 = vunpack.c.l.b16 %v44
    %v60 = vunpack.c.l.b16 %v45
    %v61 = vpack.c.b16 %v60, %v59
    %v66 = vunpack.c.l.b16 %v46
    %v67 = vunpack.c.l.b16 %v47
    %v68 = vunpack.c.l.b16 %v48
    %v69 = vunpack.c.l.b16 %v49
    %v70 = vpack.c.b16 %v67, %v66
    %v71 = vpack.c.b16 %v69, %v68
    %vm74 = vcmask 261120
    %v76 = vsel %vm74, %v61, 0
    %78 = vmatprep.subr.bf16.mxu0 0
    %79 = vmatpush1.bf16.msra.mxu0 %v70
    %80 = vmatprep.subr.bf16.mxu0 0
    %81 = vmatpush1.bf16.msra.mxu0 %v71
    %82 = vmatprep.subr.bf16.mxu0 0
    %83 = vmatpush1.bf16.msra.mxu0 0
    %84 = vmatprep.subr.bf16.mxu0 0
    %85 = vmatpush1.bf16.msra.mxu0 0
    %86 = vmatprep.subr.bf16.mxu0 0
    %87 = vmatpush1.bf16.msra.mxu0 0
    %88 = vmatprep.subr.bf16.mxu0 0
    %89 = vmatpush1.bf16.msra.mxu0 0
    %90 = vmatprep.subr.bf16.mxu0 0
    %91 = vmatpush1.bf16.msra.mxu0 0
    %92 = vmatprep.subr.bf16.mxu0 0
    %93 = vmatpush1.bf16.msra.mxu0 0
    %94 = vmatprep.subr.bf16.mxu0 0
    %95 = vmatpush1.bf16.msra.mxu0 0
    %96 = vmatprep.subr.bf16.mxu0 0
    %97 = vmatpush1.bf16.msra.mxu0 0
    %98 = vmatprep.subr.bf16.mxu0 0
    %99 = vmatpush1.bf16.msra.mxu0 0
    %100 = vmatprep.subr.bf16.mxu0 0
    %101 = vmatpush1.bf16.msra.mxu0 0
    %102 = vmatprep.subr.bf16.mxu0 0
    %103 = vmatpush1.bf16.msra.mxu0 0
    %104 = vmatprep.subr.bf16.mxu0 0
    %105 = vmatpush1.bf16.msra.mxu0 0
    %106 = vmatprep.subr.bf16.mxu0 0
    %107 = vmatpush1.bf16.msra.mxu0 0
    %108 = vmatprep.subr.bf16.mxu0 0
    %109 = vmatpush1.bf16.msra.mxu0 0
    %110 = vmatprep.mubr.bf16.mxu0 0
    %111 = vmatmul.mubr.bf16.gmra.mrb[0].mxu0 %v76
    %v112 = vpop.f32.mrb[0].mxu0
    %v113 = vadd.f32 %v55, %v112
    %v114 = vpop.f32.mrb[0].mxu0
    %v115 = vpop.f32.mrb[0].mxu0
    %v116 = vadd.f32 %v55, %v115
    %v117 = vpop.f32.mrb[0].mxu0
    %118 = vdwg.mxu0
    %vm119 = vcmask 818176
    %120 = vst.msk [vmem:[#allocation7] sm:$0xff] %vm119, %v113
    %121 = vst.msk [vmem:[#allocation7 + $0x8] sm:$0xff] %vm119, %v116
    // Predicated region
    $region22: #{tpu_custom_call.1} parent=1 // pred_check
      _
    $region23: #{tpu_custom_call.1} parent=1 // pred_check_branch
      %123 = sbr.rel (0) target = $region25
    $region24: #{tpu_custom_call.1} parent=1 // pred_region
      %s125 = ssub.s32 256, 256
      %126 = vsyncadd [#allocation4], %s125
      %s127 = sshll.u32 [#allocation7], 4
      %s128 = int_to_ptr.vmem [resolvable:$true] %s127
      %133 = dma.vmem_to_hbm [thread:$0]  %s128, 256, %s3, [#allocation4], 128, 128, 8
    $region25: #{tpu_custom_call.1} parent=1 // pred_fallthru
      _
    // Predicated region
    $region26: #{tpu_custom_call.1} parent=1 // pred_check
      _
    $region27: #{tpu_custom_call.1} parent=1 // pred_check_branch
      %135 = sbr.rel (0) target = $region29
    $region28: #{tpu_custom_call.1} parent=1 // pred_region
      %136 = dma.done [#allocation4], 256
    $region29: #{tpu_custom_call.1} parent=1 // pred_fallthru
      _
    %137 = vsyncpa [#allocation3], 1
    %138 = vsyncpa [#allocation6], 1
    %139 = vsyncpa [#allocation4], 1

</llo_original>
